<compile_context>
chip_gen: v7x
topology: tpu7x:2x2x1
jax: 0.10.0
libtpu: 0.0.40
codegen_flags: <defaults>
</compile_context>

<pallas_src>
import functools

import jax
import jax.numpy as jnp
import numpy as np
from jax.experimental import pallas as pl
from jax.experimental.pallas import tpu as pltpu


# --------------------------------------------------------------------------- #
# Pallas kernel: fused squeeze-excite for a block of Bt batch elements
# --------------------------------------------------------------------------- #
def _se_kernel(x_ref, w1_ref, w2_ref, o_ref, *, bt, inv_hw):
    """x_ref/o_ref: (Bt, C, HW) bf16   w1_ref: (Cr, C) f32   w2_ref: (C, Cr) f32."""
    # Static unroll over the Bt elements of this block.  Each iteration is an
    # independent pool -> fc1 -> relu -> fc2 -> sigmoid -> gate chain, so the
    # LLO scheduler interleaves them (element b+1's pooling hides element b's
    # MXU/EUP latency).
    for b in range(bt):
        # squeeze: global average pool over the lane-dense spatial axis,
        # accumulated in f32.
        mean = jnp.sum(x_ref[b].astype(jnp.float32), axis=1,
                       keepdims=True) * inv_hw                          # (C, 1)

        # excite: fc1 -> ReLU -> fc2 -> Sigmoid (weights in (out, in) layout).
        h = jnp.dot(w1_ref[...], mean,
                    preferred_element_type=jnp.float32)                 # (Cr, 1)
        h = jnp.maximum(h, 0.0)
        z = jnp.dot(w2_ref[...], h,
                    preferred_element_type=jnp.float32)                 # (C, 1)
        # exp and the approx reciprocal both go to the EUP slot.
        gate = pl.reciprocal(1.0 + jnp.exp(-z), approx=True)            # (C, 1)

        # scale: re-read x from VMEM for the gating multiply (keeps the big
        # slab out of vregs across the serial chain above), broadcast the
        # per-channel gate over the lane-dense spatial axis, narrow to bf16.
        o_ref[b] = (x_ref[b].astype(jnp.float32) * gate).astype(o_ref.dtype)


# --------------------------------------------------------------------------- #
# Wrapper
# --------------------------------------------------------------------------- #
def se_layer(x_nchw, w1, w2, *, max_bt=16, target_block_bytes=2 << 20):
    """x_nchw: (B, C, H, W);  w1: (C//r, C);  w2: (C, C//r).  Returns bf16."""
    B, C, H, W = x_nchw.shape
    Cr = w1.shape[0]
    HW = H * W

    # Free, layout-preserving reshape to the lane-dense (B, C, HW) form;
    # bf16 on the HBM path halves the (dominant) activation traffic.
    x2 = x_nchw.reshape(B, C, HW)
    if x2.dtype != jnp.bfloat16:
        x2 = x2.astype(jnp.bfloat16)
    w1 = w1.astype(jnp.float32)
    w2 = w2.astype(jnp.float32)

    # Pick Bt = batch elements per grid step: largest divisor of B that keeps
    # the block within the target byte budget and the unroll factor modest.
    esize = 2  # bf16
    bt = 1
    for cand in range(1, min(B, max_bt) + 1):
        if B % cand == 0 and cand * C * HW * esize <= target_block_bytes:
            bt = cand
    steps = B // bt

    # Megacore split only pays off when each core still gets several steps to
    # software-pipeline; for tiny grids keep the whole loop on one core.
    semantics = ("parallel",) if steps >= 8 else ("arbitrary",)

    block_bytes = bt * C * HW * esize
    # x block + out block, double-buffered, plus small weights / headroom.
    vmem_limit = min(64 << 20, max(16 << 20, 6 * block_bytes + (2 << 20)))

    flops = B * (2 * C * HW            # pool + gating multiply
                 + 4 * Cr * C)         # two tiny matvecs
    bytes_accessed = 2 * B * C * HW * esize + 2 * Cr * C * 4

    out = pl.pallas_call(
        functools.partial(_se_kernel, bt=bt, inv_hw=1.0 / HW),
        out_shape=jax.ShapeDtypeStruct((B, C, HW), jnp.bfloat16),
        grid=(steps,),
        in_specs=[
            pl.BlockSpec((bt, C, HW), lambda i: (i, 0, 0)),
            pl.BlockSpec((Cr, C), lambda i: (0, 0)),       # VMEM-resident weights
            pl.BlockSpec((C, Cr), lambda i: (0, 0)),
        ],
        out_specs=pl.BlockSpec((bt, C, HW), lambda i: (i, 0, 0)),
        compiler_params=pltpu.CompilerParams(
            dimension_semantics=semantics,
            vmem_limit_bytes=vmem_limit),
        cost_estimate=pl.CostEstimate(
            flops=flops, transcendentals=B * C, bytes_accessed=bytes_accessed),
    )(x2, w1, w2)

    return out.reshape(B, C, H, W)


# --------------------------------------------------------------------------- #
# Pure-JAX reference for verification
# --------------------------------------------------------------------------- #
def ref_se(x, w1, w2):
    y = jnp.mean(x, axis=(2, 3))                       # (B, C)
    y = jnp.maximum(y @ w1.T, 0.0)                     # (B, Cr)
    y = 1.0 / (1.0 + jnp.exp(-(y @ w2.T)))             # (B, C)
    return x * y[:, :, None, None]


# --------------------------------------------------------------------------- #
if __name__ == "__main__":
    key = jax.random.PRNGKey(0)
    kx, k1, k2 = jax.random.split(key, 3)

    B, C, H, W = 2, 64, 16, 16
    reduction = 16
    Cr = C // reduction

    x = jax.random.normal(kx, (B, C, H, W), jnp.float32)
    # nn.Linear weights, (out_features, in_features), no bias
    w1 = jax.random.normal(k1, (Cr, C), jnp.float32) / np.sqrt(C)
    w2 = jax.random.normal(k2, (C, Cr), jnp.float32) / np.sqrt(Cr)

    out = se_layer(x, w1, w2)
    out = jax.block_until_ready(out)

    ref = ref_se(x, w1, w2)
    # Output path is bf16 (and the sigmoid uses an approximate reciprocal),
    # so compare against the f32 reference with bf16-appropriate tolerances.
    np.testing.assert_allclose(np.asarray(out, dtype=np.float32),
                               np.asarray(ref),
                               rtol=2e-2, atol=2e-2)
    print("KERNEL_OK")
</pallas_src>

<mosaic_0001>
module attributes {stable_mosaic.version = 11 : i64} {
  func.func @_se_kernel(%arg0: i32, %arg1: memref<2x64x256xbf16, #tpu.memory_space<vmem>>, %arg2: memref<4x64xf32, #tpu.memory_space<vmem>>, %arg3: memref<64x4xf32, #tpu.memory_space<vmem>>, %arg4: memref<2x64x256xbf16, #tpu.memory_space<vmem>>) attributes {dimension_semantics = [#tpu.dimension_semantics<arbitrary>], iteration_bounds = array<i64: 1>, scalar_prefetch = 0 : i64, scratch_operands = 0 : i64, tpu.core_type = #tpu.core_type<tc>, window_params = [{transform_indices = @transform_0, window_bounds = array<i64: 2, 64, 256>}, {pipeline_mode = #tpu.pipeline_mode<synchronous>, transform_indices = @transform_1, window_bounds = array<i64: 4, 64>}, {pipeline_mode = #tpu.pipeline_mode<synchronous>, transform_indices = @transform_2, window_bounds = array<i64: 64, 4>}, {transform_indices = @transform_3, window_bounds = array<i64: 2, 64, 256>}]} {
    %c0 = arith.constant 0 : index
    %c0_0 = arith.constant 0 : index
    %c0_1 = arith.constant 0 : index
    %0 = vector.load %arg1[%c0, %c0_0, %c0_1] : memref<2x64x256xbf16, #tpu.memory_space<vmem>>, vector<1x64x256xbf16>
    %1 = vector.shape_cast %0 : vector<1x64x256xbf16> to vector<64x256xbf16>
    %2 = arith.extf %1 : vector<64x256xbf16> to vector<64x256xf32>
    %cst = arith.constant dense<0.000000e+00> : vector<64xf32>
    %3 = vector.multi_reduction <add>, %2, %cst [1] : vector<64x256xf32> to vector<64xf32>
    %4 = vector.shape_cast %3 : vector<64xf32> to vector<64x1xf32>
    %cst_2 = arith.constant 3.906250e-03 : f32
    %5 = vector.broadcast %cst_2 : f32 to vector<64x1xf32>
    %6 = arith.mulf %4, %5 : vector<64x1xf32>
    %c0_3 = arith.constant 0 : index
    %c0_4 = arith.constant 0 : index
    %7 = vector.load %arg2[%c0_3, %c0_4] : memref<4x64xf32, #tpu.memory_space<vmem>>, vector<4x64xf32>
    %cst_5 = arith.constant dense<0.000000e+00> : vector<4x1xf32>
    %8 = tpu.matmul %7, %6, %cst_5 {dimension_numbers = #tpu.dot_dimension_numbers<[1], [0], [0], [1], [0, 0, 1, 1], [], []>} : vector<4x64xf32>, vector<64x1xf32>, vector<4x1xf32> -> vector<4x1xf32>
    %cst_6 = arith.constant 0.000000e+00 : f32
    %9 = vector.broadcast %cst_6 : f32 to vector<4x1xf32>
    %10 = arith.maximumf %8, %9 : vector<4x1xf32>
    %c0_7 = arith.constant 0 : index
    %c0_8 = arith.constant 0 : index
    %11 = vector.load %arg3[%c0_7, %c0_8] : memref<64x4xf32, #tpu.memory_space<vmem>>, vector<64x4xf32>
    %cst_9 = arith.constant dense<0.000000e+00> : vector<64x1xf32>
    %12 = tpu.matmul %11, %10, %cst_9 {dimension_numbers = #tpu.dot_dimension_numbers<[1], [0], [0], [1], [0, 0, 1, 1], [], []>} : vector<64x4xf32>, vector<4x1xf32>, vector<64x1xf32> -> vector<64x1xf32>
    %cst_10 = arith.constant 0.000000e+00 : f32
    %13 = vector.broadcast %cst_10 : f32 to vector<64x1xf32>
    %14 = arith.subf %13, %12 : vector<64x1xf32>
    %15 = math.exp %14 : vector<64x1xf32>
    %cst_11 = arith.constant 1.000000e+00 : f32
    %16 = vector.broadcast %cst_11 : f32 to vector<64x1xf32>
    %17 = arith.addf %16, %15 : vector<64x1xf32>
    %18 = tpu.reciprocal %17 {approx = true} : vector<64x1xf32> -> vector<64x1xf32>
    %c0_12 = arith.constant 0 : index
    %c0_13 = arith.constant 0 : index
    %c0_14 = arith.constant 0 : index
    %19 = vector.load %arg1[%c0_12, %c0_13, %c0_14] : memref<2x64x256xbf16, #tpu.memory_space<vmem>>, vector<1x64x256xbf16>
    %20 = vector.shape_cast %19 : vector<1x64x256xbf16> to vector<64x256xbf16>
    %21 = arith.extf %20 : vector<64x256xbf16> to vector<64x256xf32>
    %22 = vector.broadcast %18 : vector<64x1xf32> to vector<64x256xf32>
    %23 = arith.mulf %21, %22 : vector<64x256xf32>
    %24 = arith.truncf %23 : vector<64x256xf32> to vector<64x256xbf16>
    %c0_15 = arith.constant 0 : index
    %c0_16 = arith.constant 0 : index
    %c0_17 = arith.constant 0 : index
    %25 = vector.load %arg4[%c0_15, %c0_16, %c0_17] : memref<2x64x256xbf16, #tpu.memory_space<vmem>>, vector<1x64x256xbf16>
    %26 = vector.shape_cast %25 : vector<1x64x256xbf16> to vector<64x256xbf16>
    %27 = vector.shape_cast %24 : vector<64x256xbf16> to vector<1x64x256xbf16>
    tpu.vector_store %arg4[%c0_15, %c0_16, %c0_17], %27 {strides = array<i32>} : memref<2x64x256xbf16, #tpu.memory_space<vmem>>, vector<1x64x256xbf16>,
    %c1 = arith.constant 1 : index
    %c0_18 = arith.constant 0 : index
    %c0_19 = arith.constant 0 : index
    %28 = vector.load %arg1[%c1, %c0_18, %c0_19] : memref<2x64x256xbf16, #tpu.memory_space<vmem>>, vector<1x64x256xbf16>
    %29 = vector.shape_cast %28 : vector<1x64x256xbf16> to vector<64x256xbf16>
    %30 = arith.extf %29 : vector<64x256xbf16> to vector<64x256xf32>
    %cst_20 = arith.constant dense<0.000000e+00> : vector<64xf32>
    %31 = vector.multi_reduction <add>, %30, %cst_20 [1] : vector<64x256xf32> to vector<64xf32>
    %32 = vector.shape_cast %31 : vector<64xf32> to vector<64x1xf32>
    %cst_21 = arith.constant 3.906250e-03 : f32
    %33 = vector.broadcast %cst_21 : f32 to vector<64x1xf32>
    %34 = arith.mulf %32, %33 : vector<64x1xf32>
    %c0_22 = arith.constant 0 : index
    %c0_23 = arith.constant 0 : index
    %35 = vector.load %arg2[%c0_22, %c0_23] : memref<4x64xf32, #tpu.memory_space<vmem>>, vector<4x64xf32>
    %cst_24 = arith.constant dense<0.000000e+00> : vector<4x1xf32>
    %36 = tpu.matmul %35, %34, %cst_24 {dimension_numbers = #tpu.dot_dimension_numbers<[1], [0], [0], [1], [0, 0, 1, 1], [], []>} : vector<4x64xf32>, vector<64x1xf32>, vector<4x1xf32> -> vector<4x1xf32>
    %cst_25 = arith.constant 0.000000e+00 : f32
    %37 = vector.broadcast %cst_25 : f32 to vector<4x1xf32>
    %38 = arith.maximumf %36, %37 : vector<4x1xf32>
    %c0_26 = arith.constant 0 : index
    %c0_27 = arith.constant 0 : index
    %39 = vector.load %arg3[%c0_26, %c0_27] : memref<64x4xf32, #tpu.memory_space<vmem>>, vector<64x4xf32>
    %cst_28 = arith.constant dense<0.000000e+00> : vector<64x1xf32>
    %40 = tpu.matmul %39, %38, %cst_28 {dimension_numbers = #tpu.dot_dimension_numbers<[1], [0], [0], [1], [0, 0, 1, 1], [], []>} : vector<64x4xf32>, vector<4x1xf32>, vector<64x1xf32> -> vector<64x1xf32>
    %cst_29 = arith.constant 0.000000e+00 : f32
    %41 = vector.broadcast %cst_29 : f32 to vector<64x1xf32>
    %42 = arith.subf %41, %40 : vector<64x1xf32>
    %43 = math.exp %42 : vector<64x1xf32>
    %cst_30 = arith.constant 1.000000e+00 : f32
    %44 = vector.broadcast %cst_30 : f32 to vector<64x1xf32>
    %45 = arith.addf %44, %43 : vector<64x1xf32>
    %46 = tpu.reciprocal %45 {approx = true} : vector<64x1xf32> -> vector<64x1xf32>
    %c1_31 = arith.constant 1 : index
    %c0_32 = arith.constant 0 : index
    %c0_33 = arith.constant 0 : index
    %47 = vector.load %arg1[%c1_31, %c0_32, %c0_33] : memref<2x64x256xbf16, #tpu.memory_space<vmem>>, vector<1x64x256xbf16>
    %48 = vector.shape_cast %47 : vector<1x64x256xbf16> to vector<64x256xbf16>
    %49 = arith.extf %48 : vector<64x256xbf16> to vector<64x256xf32>
    %50 = vector.broadcast %46 : vector<64x1xf32> to vector<64x256xf32>
    %51 = arith.mulf %49, %50 : vector<64x256xf32>
    %52 = arith.truncf %51 : vector<64x256xf32> to vector<64x256xbf16>
    %c1_34 = arith.constant 1 : index
    %c0_35 = arith.constant 0 : index
    %c0_36 = arith.constant 0 : index
    %53 = vector.load %arg4[%c1_34, %c0_35, %c0_36] : memref<2x64x256xbf16, #tpu.memory_space<vmem>>, vector<1x64x256xbf16>
    %54 = vector.shape_cast %53 : vector<1x64x256xbf16> to vector<64x256xbf16>
    %55 = vector.shape_cast %52 : vector<64x256xbf16> to vector<1x64x256xbf16>
    tpu.vector_store %arg4[%c1_34, %c0_35, %c0_36], %55 {strides = array<i32>} : memref<2x64x256xbf16, #tpu.memory_space<vmem>>, vector<1x64x256xbf16>,
    return
  }
  func.func @transform_0(%arg0: i32) -> (i32, i32, i32) {
    %c0_i32 = arith.constant 0 : i32
    %c0_i32_0 = arith.constant 0 : i32
    %c0_i32_1 = arith.constant 0 : i32
    return %arg0, %c0_i32, %c0_i32_0 : i32, i32, i32
  }
  func.func @transform_1(%arg0: i32) -> (i32, i32) {
    %c0_i32 = arith.constant 0 : i32
    %c0_i32_0 = arith.constant 0 : i32
    %c0_i32_1 = arith.constant 0 : i32
    return %c0_i32, %c0_i32_0 : i32, i32
  }
  func.func @transform_2(%arg0: i32) -> (i32, i32) {
    %c0_i32 = arith.constant 0 : i32
    %c0_i32_0 = arith.constant 0 : i32
    %c0_i32_1 = arith.constant 0 : i32
    return %c0_i32, %c0_i32_0 : i32, i32
  }
  func.func @transform_3(%arg0: i32) -> (i32, i32, i32) {
    %c0_i32 = arith.constant 0 : i32
    %c0_i32_0 = arith.constant 0 : i32
    %c0_i32_1 = arith.constant 0 : i32
    return %arg0, %c0_i32, %c0_i32_0 : i32, i32, i32
  }
}

</mosaic_0001>

<llo_original>
// kernel: tpu_custom_call.1
$region0: #{tpu_custom_call.1}
  #allocation0 [shape = 'u32[]', space=smem, size = 0x4, offset = 0x4, fixed_abs, tag = 'smem constant byte address 0x4 - core index']
  #allocation1 [shape = 'u32[144,128]{1,0:T(1,128)}', space=vmem, size = 0x12000, scoped, tag = 'internal scratch']
  %s0 = inlined_call_operand.hbm [shape: bf16[2,64,256], index: 0, kind: input, shape index: {}]
  %s1 = inlined_call_operand.vmem [shape: f32[4,64], index: 1, kind: input, shape index: {}]
  %s2 = inlined_call_operand.vmem [shape: f32[64,4], index: 2, kind: input, shape index: {}]
  %s3 = inlined_call_operand.hbm [shape: bf16[2,64,256], index: 3, kind: output, shape index: {}]
  %s4 = sld [smem:[#allocation0]]
  $region26: #{tpu_custom_call.1} parent=0
    _
  %s6 = ssub.s32 1, %s4
  %s7 = scalar_select 0, %s6, %s4
  $region1: #{tpu_custom_call.1} parent=0
    #allocation2 [shape = 'u8[65536]{0}', space=vmem, size = 0x10000, scoped, tag = 'input window, operand 0, single buffered']
    #allocation3 [shape = 's32[1]{0}', space=sflag, size = 0x4, scoped, tag = 'scoped memory for tpu_custom_call.1']
    #allocation4 [shape = 's32[1]{0}', space=sflag, size = 0x4, scoped, tag = 'scoped memory for tpu_custom_call.1']
    #allocation5 [shape = 'u8[65536]{0}', space=vmem, size = 0x10000, scoped, tag = 'output window, operand 0, single buffered']
    %8 = vsyncpa [#allocation3], 0
    %9 = vsyncpa [#allocation4], 0
    // Predicated region
    $region2: #{tpu_custom_call.1} parent=1 // pred_check
      _
    $region3: #{tpu_custom_call.1} parent=1 // pred_check_branch
      %11 = sbr.rel (0) target = $region5
    $region4: #{tpu_custom_call.1} parent=1 // pred_region
      %s13 = ssub.s32 2048, 2048
      %14 = vsyncadd [#allocation3], %s13
      %s15 = sshll.u32 [#allocation2], 4
      %s16 = int_to_ptr.vmem [resolvable:$true] %s15
      %21 = dma.hbm_to_vmem [thread:$0]  %s0, 2048, %s16, [#allocation3], 128, 128, 8
    $region5: #{tpu_custom_call.1} parent=1 // pred_fallthru
      _
    // Predicated region
    $region6: #{tpu_custom_call.1} parent=1 // pred_check
      _
    $region7: #{tpu_custom_call.1} parent=1 // pred_check_branch
      %23 = sbr.rel (0) target = $region9
    $region8: #{tpu_custom_call.1} parent=1 // pred_region
      _
    $region9: #{tpu_custom_call.1} parent=1 // pred_fallthru
      _
    // Predicated region
    $region10: #{tpu_custom_call.1} parent=1 // pred_check
      _
    $region11: #{tpu_custom_call.1} parent=1 // pred_check_branch
      %25 = sbr.rel (0) target = $region13
    $region12: #{tpu_custom_call.1} parent=1 // pred_region
      _
    $region13: #{tpu_custom_call.1} parent=1 // pred_fallthru
      _
    // Predicated region
    $region14: #{tpu_custom_call.1} parent=1 // pred_check
      _
    $region15: #{tpu_custom_call.1} parent=1 // pred_check_branch
      %27 = sbr.rel (0) target = $region17
    $region16: #{tpu_custom_call.1} parent=1 // pred_region
      %28 = dma.done [#allocation3], 2048
    $region17: #{tpu_custom_call.1} parent=1 // pred_fallthru
      _
    %v29 = vld [vmem:[#allocation2] sm:$0xff]
    %v30 = vld [vmem:[#allocation2 + $0x8] sm:$0xff]
    %v31 = vld [vmem:[#allocation2 + $0x10] sm:$0xff]
    %v32 = vld [vmem:[#allocation2 + $0x18] sm:$0xff]
    %v33 = vld [vmem:[#allocation2 + $0x20] sm:$0xff]
    %v34 = vld [vmem:[#allocation2 + $0x28] sm:$0xff]
    %v35 = vld [vmem:[#allocation2 + $0x30] sm:$0xff]
    %v36 = vld [vmem:[#allocation2 + $0x38] sm:$0xff]
    %v37 = vunpack.c.l.bf16 %v29
    %v38 = vunpack.c.h.bf16 %v29
    %v39 = vunpack.c.l.bf16 %v30
    %v40 = vunpack.c.h.bf16 %v30
    %v41 = vunpack.c.l.bf16 %v31
    %v42 = vunpack.c.h.bf16 %v31
    %v43 = vunpack.c.l.bf16 %v32
    %v44 = vunpack.c.h.bf16 %v32
    %v45 = vunpack.c.l.bf16 %v33
    %v46 = vunpack.c.h.bf16 %v33
    %v47 = vunpack.c.l.bf16 %v34
    %v48 = vunpack.c.h.bf16 %v34
    %v49 = vunpack.c.l.bf16 %v35
    %v50 = vunpack.c.h.bf16 %v35
    %v51 = vunpack.c.l.bf16 %v36
    %v52 = vunpack.c.h.bf16 %v36
    %v53 = vadd.f32 %v37, %v38
    %54 = vadd.xlane.f32.xlu0 %v53
    %v55 = vpop.xlane.xlu0 %54
    %v56 = vadd.f32 %v39, %v40
    %57 = vadd.xlane.f32.xlu0 %v56
    %v58 = vpop.xlane.xlu0 %57
    %v59 = vadd.f32 %v41, %v42
    %60 = vadd.xlane.f32.xlu0 %v59
    %v61 = vpop.xlane.xlu0 %60
    %v62 = vadd.f32 %v43, %v44
    %63 = vadd.xlane.f32.xlu0 %v62
    %v64 = vpop.xlane.xlu0 %63
    %v65 = vadd.f32 %v45, %v46
    %66 = vadd.xlane.f32.xlu0 %v65
    %v67 = vpop.xlane.xlu0 %66
    %v68 = vadd.f32 %v47, %v48
    %69 = vadd.xlane.f32.xlu0 %v68
    %v70 = vpop.xlane.xlu0 %69
    %v71 = vadd.f32 %v49, %v50
    %72 = vadd.xlane.f32.xlu0 %v71
    %v73 = vpop.xlane.xlu0 %72
    %v74 = vadd.f32 %v51, %v52
    %75 = vadd.xlane.f32.xlu0 %v74
    %v76 = vpop.xlane.xlu0 %75
    %v77 = vmul.f32 %v55, 0.00390625
    %v78 = vmul.f32 %v58, 0.00390625
    %v79 = vmul.f32 %v61, 0.00390625
    %v80 = vmul.f32 %v64, 0.00390625
    %v81 = vmul.f32 %v67, 0.00390625
    %v82 = vmul.f32 %v70, 0.00390625
    %v83 = vmul.f32 %v73, 0.00390625
    %v84 = vmul.f32 %v76, 0.00390625
    %v85 = vld [vmem:[%s1] sm:$0xf]
    %vm86 = vcmask 523264
    %v88 = vsel %vm86, %v85, 0
    %90 = vmatprep.subr.mxu0 0.0
    %91 = vmatpush1.msra.mxu0 %v77
    %92 = vmatprep.subr.mxu0 0.0
    %93 = vmatpush1.msra.mxu0 %v78
    %94 = vmatprep.subr.mxu0 0.0
    %95 = vmatpush1.msra.mxu0 %v79
    %96 = vmatprep.subr.mxu0 0.0
    %97 = vmatpush1.msra.mxu0 %v80
    %98 = vmatprep.subr.mxu0 0.0
    %99 = vmatpush1.msra.mxu0 %v81
    %100 = vmatprep.subr.mxu0 0.0
    %101 = vmatpush1.msra.mxu0 %v82
    %102 = vmatprep.subr.mxu0 0.0
    %103 = vmatpush1.msra.mxu0 %v83
    %104 = vmatprep.subr.mxu0 0.0
    %105 = vmatpush1.msra.mxu0 %v84
    %106 = vmatprep.subr.mxu0 0.0
    %107 = vmatpush1.msra.mxu0 0.0
    %108 = vmatprep.subr.mxu0 0.0
    %109 = vmatpush1.msra.mxu0 0.0
    %110 = vmatprep.subr.mxu0 0.0
    %111 = vmatpush1.msra.mxu0 0.0
    %112 = vmatprep.subr.mxu0 0.0
    %113 = vmatpush1.msra.mxu0 0.0
    %114 = vmatprep.subr.mxu0 0.0
    %115 = vmatpush1.msra.mxu0 0.0
    %116 = vmatprep.subr.mxu0 0.0
    %117 = vmatpush1.msra.mxu0 0.0
    %118 = vmatprep.subr.mxu0 0.0
    %119 = vmatpush1.msra.mxu0 0.0
    %120 = vmatprep.subr.mxu0 0.0
    %121 = vmatpush1.msra.mxu0 0.0
    %122 = vmatprep.subr.mxu0 0.0
    %123 = vmatpush1.msra.mxu0 0.0
    %124 = vmatprep.subr.mxu0 0.0
    %125 = vmatpush1.msra.mxu0 0.0
    %126 = vmatprep.subr.mxu0 0.0
    %127 = vmatpush1.msra.mxu0 0.0
    %128 = vmatprep.subr.mxu0 0.0
    %129 = vmatpush1.msra.mxu0 0.0
    %130 = vmatprep.subr.mxu0 0.0
    %131 = vmatpush1.msra.mxu0 0.0
    %132 = vmatprep.subr.mxu0 0.0
    %133 = vmatpush1.msra.mxu0 0.0
    %134 = vmatprep.subr.mxu0 0.0
    %135 = vmatpush1.msra.mxu0 0.0
    %136 = vmatprep.subr.mxu0 0.0
    %137 = vmatpush1.msra.mxu0 0.0
    %138 = vmatprep.subr.mxu0 0.0
    %139 = vmatpush1.msra.mxu0 0.0
    %140 = vmatprep.subr.mxu0 0.0
    %141 = vmatpush1.msra.mxu0 0.0
    %142 = vmatprep.subr.mxu0 0.0
    %143 = vmatpush1.msra.mxu0 0.0
    %144 = vmatprep.subr.mxu0 0.0
    %145 = vmatpush1.msra.mxu0 0.0
    %146 = vmatprep.subr.mxu0 0.0
    %147 = vmatpush1.msra.mxu0 0.0
    %148 = vmatprep.subr.mxu0 0.0
    %149 = vmatpush1.msra.mxu0 0.0
    %150 = vmatprep.subr.mxu0 0.0
    %151 = vmatpush1.msra.mxu0 0.0
    %152 = vmatprep.subr.mxu0 0.0
    %153 = vmatpush1.msra.mxu0 0.0
    %154 = vmatprep.mubr.f32.mxu0 0.0
    %155 = vmatmul.mubr.f32.gmra.mrb[0].mxu0 %v88
    %v156 = vpop.f32.mrb[0].mxu0
    %v157 = vadd.f32 0.0, %v156
    %v158 = vpop.f32.mrb[0].mxu0
    %159 = vdwg.mxu0
    %v160 = vmax.f32 %v157, 0.0
    %v161 = vld [vmem:[%s2] sm:$0xff]
    %v162 = vld [vmem:[%s2 + $0x8] sm:$0xff]
    %v163 = vld [vmem:[%s2 + $0x10] sm:$0xff]
    %v164 = vld [vmem:[%s2 + $0x18] sm:$0xff]
    %v165 = vld [vmem:[%s2 + $0x20] sm:$0xff]
    %v166 = vld [vmem:[%s2 + $0x28] sm:$0xff]
    %v167 = vld [vmem:[%s2 + $0x30] sm:$0xff]
    %v168 = vld [vmem:[%s2 + $0x38] sm:$0xff]
    %vm169 = vcmask 31744
    %v171 = vsel %vm169, %v161, 0
    %v174 = vsel %vm169, %v162, 0
    %v177 = vsel %vm169, %v163, 0
    %v180 = vsel %vm169, %v164, 0
    %v183 = vsel %vm169, %v165, 0
    %v186 = vsel %vm169, %v166, 0
    %v189 = vsel %vm169, %v167, 0
    %v192 = vsel %vm169, %v168, 0
    %vm194 = vcmask 1043456
    %v196 = vsel %vm194, %v160, 0
    %198 = vmatprep.subr.mxu0 0.0
    %199 = vmatpush1.msra.mxu0 %v196
    %200 = vmatprep.subr.mxu0 0.0
    %201 = vmatpush1.msra.mxu0 0.0
    %202 = vmatprep.subr.mxu0 0.0
    %203 = vmatpush1.msra.mxu0 0.0
    %204 = vmatprep.subr.mxu0 0.0
    %205 = vmatpush1.msra.mxu0 0.0
    %206 = vmatprep.subr.mxu0 0.0
    %207 = vmatpush1.msra.mxu0 0.0
    %208 = vmatprep.subr.mxu0 0.0
    %209 = vmatpush1.msra.mxu0 0.0
    %210 = vmatprep.subr.mxu0 0.0
    %211 = vmatpush1.msra.mxu0 0.0
    %212 = vmatprep.subr.mxu0 0.0
    %213 = vmatpush1.msra.mxu0 0.0
    %214 = vmatprep.subr.mxu0 0.0
    %215 = vmatpush1.msra.mxu0 0.0
    %216 = vmatprep.subr.mxu0 0.0
    %217 = vmatpush1.msra.mxu0 0.0
    %218 = vmatprep.subr.mxu0 0.0
    %219 = vmatpush1.msra.mxu0 0.0
    %220 = vmatprep.subr.mxu0 0.0
    %221 = vmatpush1.msra.mxu0 0.0
    %222 = vmatprep.subr.mxu0 0.0
    %223 = vmatpush1.msra.mxu0 0.0
    %224 = vmatprep.subr.mxu0 0.0
    %225 = vmatpush1.msra.mxu0 0.0
    %226 = vmatprep.subr.mxu0 0.0
    %227 = vmatpush1.msra.mxu0 0.0
    %228 = vmatprep.subr.mxu0 0.0
    %229 = vmatpush1.msra.mxu0 0.0
    %230 = vmatprep.subr.mxu0 0.0
    %231 = vmatpush1.msra.mxu0 0.0
    %232 = vmatprep.subr.mxu0 0.0
    %233 = vmatpush1.msra.mxu0 0.0
    %234 = vmatprep.subr.mxu0 0.0
    %235 = vmatpush1.msra.mxu0 0.0
    %236 = vmatprep.subr.mxu0 0.0
    %237 = vmatpush1.msra.mxu0 0.0
    %238 = vmatprep.subr.mxu0 0.0
    %239 = vmatpush1.msra.mxu0 0.0
    %240 = vmatprep.subr.mxu0 0.0
    %241 = vmatpush1.msra.mxu0 0.0
    %242 = vmatprep.subr.mxu0 0.0
    %243 = vmatpush1.msra.mxu0 0.0
    %244 = vmatprep.subr.mxu0 0.0
    %245 = vmatpush1.msra.mxu0 0.0
    %246 = vmatprep.subr.mxu0 0.0
    %247 = vmatpush1.msra.mxu0 0.0
    %248 = vmatprep.subr.mxu0 0.0
    %249 = vmatpush1.msra.mxu0 0.0
    %250 = vmatprep.subr.mxu0 0.0
    %251 = vmatpush1.msra.mxu0 0.0
    %252 = vmatprep.subr.mxu0 0.0
    %253 = vmatpush1.msra.mxu0 0.0
    %254 = vmatprep.subr.mxu0 0.0
    %255 = vmatpush1.msra.mxu0 0.0
    %256 = vmatprep.subr.mxu0 0.0
    %257 = vmatpush1.msra.mxu0 0.0
    %258 = vmatprep.subr.mxu0 0.0
    %259 = vmatpush1.msra.mxu0 0.0
    %260 = vmatprep.subr.mxu0 0.0
    %261 = vmatpush1.msra.mxu0 0.0
    %262 = vmatprep.mubr.f32.mxu0 0.0
    %263 = vmatmul.mubr.f32.gmra.mrb[0].mxu0 %v171
    %v264 = vpop.f32.mrb[0].mxu0
    %v265 = vadd.f32 0.0, %v264
    %v266 = vpop.f32.mrb[0].mxu0
    %267 = vmatprep.mubr.f32.mxu0 0.0
    %268 = vmatmul.mubr.f32.gmra.mrb[0].mxu0 %v174
    %v269 = vpop.f32.mrb[0].mxu0
    %v270 = vadd.f32 0.0, %v269
    %v271 = vpop.f32.mrb[0].mxu0
    %272 = vmatprep.mubr.f32.mxu0 0.0
    %273 = vmatmul.mubr.f32.gmra.mrb[0].mxu0 %v177
    %v274 = vpop.f32.mrb[0].mxu0
    %v275 = vadd.f32 0.0, %v274
    %v276 = vpop.f32.mrb[0].mxu0
    %277 = vmatprep.mubr.f32.mxu0 0.0
    %278 = vmatmul.mubr.f32.gmra.mrb[0].mxu0 %v180
    %v279 = vpop.f32.mrb[0].mxu0
    %v280 = vadd.f32 0.0, %v279
    %v281 = vpop.f32.mrb[0].mxu0
    %282 = vmatprep.mubr.f32.mxu0 0.0
    %283 = vmatmul.mubr.f32.gmra.mrb[0].mxu0 %v183
    %v284 = vpop.f32.mrb[0].mxu0
    %v285 = vadd.f32 0.0, %v284
    %v286 = vpop.f32.mrb[0].mxu0
    %287 = vmatprep.mubr.f32.mxu0 0.0
    %288 = vmatmul.mubr.f32.gmra.mrb[0].mxu0 %v186
    %v289 = vpop.f32.mrb[0].mxu0
    %v290 = vadd.f32 0.0, %v289
    %v291 = vpop.f32.mrb[0].mxu0
    %292 = vmatprep.mubr.f32.mxu0 0.0
    %293 = vmatmul.mubr.f32.gmra.mrb[0].mxu0 %v189
    %v294 = vpop.f32.mrb[0].mxu0
    %v295 = vadd.f32 0.0, %v294
    %v296 = vpop.f32.mrb[0].mxu0
    %297 = vmatprep.mubr.f32.mxu0 0.0
    %298 = vmatmul.mubr.f32.gmra.mrb[0].mxu0 %v192
    %v299 = vpop.f32.mrb[0].mxu0
    %v300 = vadd.f32 0.0, %v299
    %v301 = vpop.f32.mrb[0].mxu0
    %302 = vdwg.mxu0
    %v303 = vsub.f32 0.0, %v265
    %v304 = vsub.f32 0.0, %v270
    %v305 = vsub.f32 0.0, %v275
    %v306 = vsub.f32 0.0, %v280
    %v307 = vsub.f32 0.0, %v285
    %v308 = vsub.f32 0.0, %v290
    %v309 = vsub.f32 0.0, %v295
    %v310 = vsub.f32 0.0, %v300
    %v311 = vmul.f32 %v303, 1.442695
    %v312 = vpow.pop %v311
    %v313 = vmul.f32 %v304, 1.442695
    %v314 = vpow.pop %v313
    %v315 = vmul.f32 %v305, 1.442695
    %v316 = vpow.pop %v315
    %v317 = vmul.f32 %v306, 1.442695
    %v318 = vpow.pop %v317
    %v319 = vmul.f32 %v307, 1.442695
    %v320 = vpow.pop %v319
    %v321 = vmul.f32 %v308, 1.442695
    %v322 = vpow.pop %v321
    %v323 = vmul.f32 %v309, 1.442695
    %v324 = vpow.pop %v323
    %v325 = vmul.f32 %v310, 1.442695
    %v326 = vpow.pop %v325
    %v327 = vadd.f32 %v312, 1.0
    %v328 = vadd.f32 %v314, 1.0
    %v329 = vadd.f32 %v316, 1.0
    %v330 = vadd.f32 %v318, 1.0
    %v331 = vadd.f32 %v320, 1.0
    %v332 = vadd.f32 %v322, 1.0
    %v333 = vadd.f32 %v324, 1.0
    %v334 = vadd.f32 %v326, 1.0
    %v335 = vrcp.pop %v327
    %v336 = vrcp.pop %v328
    %v337 = vrcp.pop %v329
    %v338 = vrcp.pop %v330
    %v339 = vrcp.pop %v331
    %v340 = vrcp.pop %v332
    %v341 = vrcp.pop %v333
    %v342 = vrcp.pop %v334
    %344 = vset.pattern.permute.xlu0 0
    %345 = vperm.xlu0 %344, %v335
    %v346 = vpop.permute.xlu0 %345
    %349 = vset.pattern.permute.xlu0 0
    %350 = vperm.xlu0 %349, %v336
    %v351 = vpop.permute.xlu0 %350
    %354 = vset.pattern.permute.xlu0 0
    %355 = vperm.xlu0 %354, %v337
    %v356 = vpop.permute.xlu0 %355
    %359 = vset.pattern.permute.xlu0 0
    %360 = vperm.xlu0 %359, %v338
    %v361 = vpop.permute.xlu0 %360
    %364 = vset.pattern.permute.xlu0 0
    %365 = vperm.xlu0 %364, %v339
    %v366 = vpop.permute.xlu0 %365
    %369 = vset.pattern.permute.xlu0 0
    %370 = vperm.xlu0 %369, %v340
    %v371 = vpop.permute.xlu0 %370
    %374 = vset.pattern.permute.xlu0 0
    %375 = vperm.xlu0 %374, %v341
    %v376 = vpop.permute.xlu0 %375
    %379 = vset.pattern.permute.xlu0 0
    %380 = vperm.xlu0 %379, %v342
    %v381 = vpop.permute.xlu0 %380
    %v383 = vmul.f32 %v37, %v346
    %v384 = vmul.f32 %v38, %v346
    %v385 = vmul.f32 %v39, %v351
    %v386 = vmul.f32 %v40, %v351
    %v387 = vmul.f32 %v41, %v356
    %v388 = vmul.f32 %v42, %v356
    %v389 = vmul.f32 %v43, %v361
    %v390 = vmul.f32 %v44, %v361
    %v391 = vmul.f32 %v45, %v366
    %v392 = vmul.f32 %v46, %v366
    %v393 = vmul.f32 %v47, %v371
    %v394 = vmul.f32 %v48, %v371
    %v395 = vmul.f32 %v49, %v376
    %v396 = vmul.f32 %v50, %v376
    %v397 = vmul.f32 %v51, %v381
    %v398 = vmul.f32 %v52, %v381
    %v399 = vpack.c.bf16 %v385, %v383
    %v400 = vpack.c.bf16 %v386, %v384
    %v401 = vpack.c.bf16 %v389, %v387
    %v402 = vpack.c.bf16 %v390, %v388
    %v403 = vpack.c.bf16 %v393, %v391
    %v404 = vpack.c.bf16 %v394, %v392
    %v405 = vpack.c.bf16 %v397, %v395
    %v406 = vpack.c.bf16 %v398, %v396
    %v415 = vunpack.c.l.b16 %v399
    %v416 = vunpack.c.l.b16 %v400
    %v417 = vunpack.c.h.b16 %v399
    %v418 = vunpack.c.h.b16 %v400
    %v419 = vunpack.c.l.b16 %v401
    %v420 = vunpack.c.l.b16 %v402
    %v421 = vunpack.c.h.b16 %v401
    %v422 = vunpack.c.h.b16 %v402
    %v423 = vunpack.c.l.b16 %v403
    %v424 = vunpack.c.l.b16 %v404
    %v425 = vunpack.c.h.b16 %v403
    %v426 = vunpack.c.h.b16 %v404
    %v427 = vunpack.c.l.b16 %v405
    %v428 = vunpack.c.l.b16 %v406
    %v429 = vunpack.c.h.b16 %v405
    %v430 = vunpack.c.h.b16 %v406
    %v431 = vpack.c.b16 %v416, %v415
    %v432 = vpack.c.b16 %v418, %v417
    %v433 = vpack.c.b16 %v420, %v419
    %v434 = vpack.c.b16 %v422, %v421
    %v435 = vpack.c.b16 %v424, %v423
    %v436 = vpack.c.b16 %v426, %v425
    %v437 = vpack.c.b16 %v428, %v427
    %v438 = vpack.c.b16 %v430, %v429
    %447 = vst [vmem:[#allocation5] sm:$0xff] %v431
    %448 = vst [vmem:[#allocation5 + $0x8] sm:$0xff] %v432
    %449 = vst [vmem:[#allocation5 + $0x10] sm:$0xff] %v433
    %450 = vst [vmem:[#allocation5 + $0x18] sm:$0xff] %v434
    %451 = vst [vmem:[#allocation5 + $0x20] sm:$0xff] %v435
    %452 = vst [vmem:[#allocation5 + $0x28] sm:$0xff] %v436
    %453 = vst [vmem:[#allocation5 + $0x30] sm:$0xff] %v437
    %454 = vst [vmem:[#allocation5 + $0x38] sm:$0xff] %v438
    %s455 = scalar_lea.vmem [#allocation2], 64
    %v456 = vld [vmem:[%s455] sm:$0xff]
    %v457 = vld [vmem:[%s455 + $0x8] sm:$0xff]
    %v458 = vld [vmem:[%s455 + $0x10] sm:$0xff]
    %v459 = vld [vmem:[%s455 + $0x18] sm:$0xff]
    %v460 = vld [vmem:[%s455 + $0x20] sm:$0xff]
    %v461 = vld [vmem:[%s455 + $0x28] sm:$0xff]
    %v462 = vld [vmem:[%s455 + $0x30] sm:$0xff]
    %v463 = vld [vmem:[%s455 + $0x38] sm:$0xff]
    %v464 = vunpack.c.l.bf16 %v456
    %v465 = vunpack.c.h.bf16 %v456
    %v466 = vunpack.c.l.bf16 %v457
    %v467 = vunpack.c.h.bf16 %v457
    %v468 = vunpack.c.l.bf16 %v458
    %v469 = vunpack.c.h.bf16 %v458
    %v470 = vunpack.c.l.bf16 %v459
    %v471 = vunpack.c.h.bf16 %v459
    %v472 = vunpack.c.l.bf16 %v460
    %v473 = vunpack.c.h.bf16 %v460
    %v474 = vunpack.c.l.bf16 %v461
    %v475 = vunpack.c.h.bf16 %v461
    %v476 = vunpack.c.l.bf16 %v462
    %v477 = vunpack.c.h.bf16 %v462
    %v478 = vunpack.c.l.bf16 %v463
    %v479 = vunpack.c.h.bf16 %v463
    %v480 = vadd.f32 %v464, %v465
    %481 = vadd.xlane.f32.xlu0 %v480
    %v482 = vpop.xlane.xlu0 %481
    %v483 = vadd.f32 %v466, %v467
    %484 = vadd.xlane.f32.xlu0 %v483
    %v485 = vpop.xlane.xlu0 %484
    %v486 = vadd.f32 %v468, %v469
    %487 = vadd.xlane.f32.xlu0 %v486
    %v488 = vpop.xlane.xlu0 %487
    %v489 = vadd.f32 %v470, %v471
    %490 = vadd.xlane.f32.xlu0 %v489
    %v491 = vpop.xlane.xlu0 %490
    %v492 = vadd.f32 %v472, %v473
    %493 = vadd.xlane.f32.xlu0 %v492
    %v494 = vpop.xlane.xlu0 %493
    %v495 = vadd.f32 %v474, %v475
    %496 = vadd.xlane.f32.xlu0 %v495
    %v497 = vpop.xlane.xlu0 %496
    %v498 = vadd.f32 %v476, %v477
    %499 = vadd.xlane.f32.xlu0 %v498
    %v500 = vpop.xlane.xlu0 %499
    %v501 = vadd.f32 %v478, %v479
    %502 = vadd.xlane.f32.xlu0 %v501
    %v503 = vpop.xlane.xlu0 %502
    %v504 = vmul.f32 %v482, 0.00390625
    %v505 = vmul.f32 %v485, 0.00390625
    %v506 = vmul.f32 %v488, 0.00390625
    %v507 = vmul.f32 %v491, 0.00390625
    %v508 = vmul.f32 %v494, 0.00390625
    %v509 = vmul.f32 %v497, 0.00390625
    %v510 = vmul.f32 %v500, 0.00390625
    %v511 = vmul.f32 %v503, 0.00390625
    %v512 = vld [vmem:[%s1] sm:$0xf]
    %v514 = vsel %vm86, %v512, 0
    %516 = vmatprep.subr.mxu0 0.0
    %517 = vmatpush1.msra.mxu0 %v504
    %518 = vmatprep.subr.mxu0 0.0
    %519 = vmatpush1.msra.mxu0 %v505
    %520 = vmatprep.subr.mxu0 0.0
    %521 = vmatpush1.msra.mxu0 %v506
    %522 = vmatprep.subr.mxu0 0.0
    %523 = vmatpush1.msra.mxu0 %v507
    %524 = vmatprep.subr.mxu0 0.0
    %525 = vmatpush1.msra.mxu0 %v508
    %526 = vmatprep.subr.mxu0 0.0
    %527 = vmatpush1.msra.mxu0 %v509
    %528 = vmatprep.subr.mxu0 0.0
    %529 = vmatpush1.msra.mxu0 %v510
    %530 = vmatprep.subr.mxu0 0.0
    %531 = vmatpush1.msra.mxu0 %v511
    %532 = vmatprep.subr.mxu0 0.0
    %533 = vmatpush1.msra.mxu0 0.0
    %534 = vmatprep.subr.mxu0 0.0
    %535 = vmatpush1.msra.mxu0 0.0
    %536 = vmatprep.subr.mxu0 0.0
    %537 = vmatpush1.msra.mxu0 0.0
    %538 = vmatprep.subr.mxu0 0.0
    %539 = vmatpush1.msra.mxu0 0.0
    %540 = vmatprep.subr.mxu0 0.0
    %541 = vmatpush1.msra.mxu0 0.0
    %542 = vmatprep.subr.mxu0 0.0
    %543 = vmatpush1.msra.mxu0 0.0
    %544 = vmatprep.subr.mxu0 0.0
    %545 = vmatpush1.msra.mxu0 0.0
    %546 = vmatprep.subr.mxu0 0.0
    %547 = vmatpush1.msra.mxu0 0.0
    %548 = vmatprep.subr.mxu0 0.0
    %549 = vmatpush1.msra.mxu0 0.0
    %550 = vmatprep.subr.mxu0 0.0
    %551 = vmatpush1.msra.mxu0 0.0
    %552 = vmatprep.subr.mxu0 0.0
    %553 = vmatpush1.msra.mxu0 0.0
    %554 = vmatprep.subr.mxu0 0.0
    %555 = vmatpush1.msra.mxu0 0.0
    %556 = vmatprep.subr.mxu0 0.0
    %557 = vmatpush1.msra.mxu0 0.0
    %558 = vmatprep.subr.mxu0 0.0
    %559 = vmatpush1.msra.mxu0 0.0
    %560 = vmatprep.subr.mxu0 0.0
    %561 = vmatpush1.msra.mxu0 0.0
    %562 = vmatprep.subr.mxu0 0.0
    %563 = vmatpush1.msra.mxu0 0.0
    %564 = vmatprep.subr.mxu0 0.0
    %565 = vmatpush1.msra.mxu0 0.0
    %566 = vmatprep.subr.mxu0 0.0
    %567 = vmatpush1.msra.mxu0 0.0
    %568 = vmatprep.subr.mxu0 0.0
    %569 = vmatpush1.msra.mxu0 0.0
    %570 = vmatprep.subr.mxu0 0.0
    %571 = vmatpush1.msra.mxu0 0.0
    %572 = vmatprep.subr.mxu0 0.0
    %573 = vmatpush1.msra.mxu0 0.0
    %574 = vmatprep.subr.mxu0 0.0
    %575 = vmatpush1.msra.mxu0 0.0
    %576 = vmatprep.subr.mxu0 0.0
    %577 = vmatpush1.msra.mxu0 0.0
    %578 = vmatprep.subr.mxu0 0.0
    %579 = vmatpush1.msra.mxu0 0.0
    %580 = vmatprep.mubr.f32.mxu0 0.0
    %581 = vmatmul.mubr.f32.gmra.mrb[0].mxu0 %v514
    %v582 = vpop.f32.mrb[0].mxu0
    %v583 = vadd.f32 0.0, %v582
    %v584 = vpop.f32.mrb[0].mxu0
    %585 = vdwg.mxu0
    %v586 = vmax.f32 %v583, 0.0
    %v587 = vld [vmem:[%s2] sm:$0xff]
    %v588 = vld [vmem:[%s2 + $0x8] sm:$0xff]
    %v589 = vld [vmem:[%s2 + $0x10] sm:$0xff]
    %v590 = vld [vmem:[%s2 + $0x18] sm:$0xff]
    %v591 = vld [vmem:[%s2 + $0x20] sm:$0xff]
    %v592 = vld [vmem:[%s2 + $0x28] sm:$0xff]
    %v593 = vld [vmem:[%s2 + $0x30] sm:$0xff]
    %v594 = vld [vmem:[%s2 + $0x38] sm:$0xff]
    %v596 = vsel %vm169, %v587, 0
    %v599 = vsel %vm169, %v588, 0
    %v602 = vsel %vm169, %v589, 0
    %v605 = vsel %vm169, %v590, 0
    %v608 = vsel %vm169, %v591, 0
    %v611 = vsel %vm169, %v592, 0
    %v614 = vsel %vm169, %v593, 0
    %v617 = vsel %vm169, %v594, 0
    %v620 = vsel %vm194, %v586, 0
    %622 = vmatprep.subr.mxu0 0.0
    %623 = vmatpush1.msra.mxu0 %v620
    %624 = vmatprep.subr.mxu0 0.0
    %625 = vmatpush1.msra.mxu0 0.0
    %626 = vmatprep.subr.mxu0 0.0
    %627 = vmatpush1.msra.mxu0 0.0
    %628 = vmatprep.subr.mxu0 0.0
    %629 = vmatpush1.msra.mxu0 0.0
    %630 = vmatprep.subr.mxu0 0.0
    %631 = vmatpush1.msra.mxu0 0.0
    %632 = vmatprep.subr.mxu0 0.0
    %633 = vmatpush1.msra.mxu0 0.0
    %634 = vmatprep.subr.mxu0 0.0
    %635 = vmatpush1.msra.mxu0 0.0
    %636 = vmatprep.subr.mxu0 0.0
    %637 = vmatpush1.msra.mxu0 0.0
    %638 = vmatprep.subr.mxu0 0.0
    %639 = vmatpush1.msra.mxu0 0.0
    %640 = vmatprep.subr.mxu0 0.0
    %641 = vmatpush1.msra.mxu0 0.0
    %642 = vmatprep.subr.mxu0 0.0
    %643 = vmatpush1.msra.mxu0 0.0
    %644 = vmatprep.subr.mxu0 0.0
    %645 = vmatpush1.msra.mxu0 0.0
    %646 = vmatprep.subr.mxu0 0.0
    %647 = vmatpush1.msra.mxu0 0.0
    %648 = vmatprep.subr.mxu0 0.0
    %649 = vmatpush1.msra.mxu0 0.0
    %650 = vmatprep.subr.mxu0 0.0
    %651 = vmatpush1.msra.mxu0 0.0
    %652 = vmatprep.subr.mxu0 0.0
    %653 = vmatpush1.msra.mxu0 0.0
    %654 = vmatprep.subr.mxu0 0.0
    %655 = vmatpush1.msra.mxu0 0.0
    %656 = vmatprep.subr.mxu0 0.0
    %657 = vmatpush1.msra.mxu0 0.0
    %658 = vmatprep.subr.mxu0 0.0
    %659 = vmatpush1.msra.mxu0 0.0
    %660 = vmatprep.subr.mxu0 0.0
    %661 = vmatpush1.msra.mxu0 0.0
    %662 = vmatprep.subr.mxu0 0.0
    %663 = vmatpush1.msra.mxu0 0.0
    %664 = vmatprep.subr.mxu0 0.0
    %665 = vmatpush1.msra.mxu0 0.0
    %666 = vmatprep.subr.mxu0 0.0
    %667 = vmatpush1.msra.mxu0 0.0
    %668 = vmatprep.subr.mxu0 0.0
    %669 = vmatpush1.msra.mxu0 0.0
    %670 = vmatprep.subr.mxu0 0.0
    %671 = vmatpush1.msra.mxu0 0.0
    %672 = vmatprep.subr.mxu0 0.0
    %673 = vmatpush1.msra.mxu0 0.0
    %674 = vmatprep.subr.mxu0 0.0
    %675 = vmatpush1.msra.mxu0 0.0
    %676 = vmatprep.subr.mxu0 0.0
    %677 = vmatpush1.msra.mxu0 0.0
    %678 = vmatprep.subr.mxu0 0.0
    %679 = vmatpush1.msra.mxu0 0.0
    %680 = vmatprep.subr.mxu0 0.0
    %681 = vmatpush1.msra.mxu0 0.0
    %682 = vmatprep.subr.mxu0 0.0
    %683 = vmatpush1.msra.mxu0 0.0
    %684 = vmatprep.subr.mxu0 0.0
    %685 = vmatpush1.msra.mxu0 0.0
    %686 = vmatprep.mubr.f32.mxu0 0.0
    %687 = vmatmul.mubr.f32.gmra.mrb[0].mxu0 %v596
    %v688 = vpop.f32.mrb[0].mxu0
    %v689 = vadd.f32 0.0, %v688
    %v690 = vpop.f32.mrb[0].mxu0
    %691 = vmatprep.mubr.f32.mxu0 0.0
    %692 = vmatmul.mubr.f32.gmra.mrb[0].mxu0 %v599
    %v693 = vpop.f32.mrb[0].mxu0
    %v694 = vadd.f32 0.0, %v693
    %v695 = vpop.f32.mrb[0].mxu0
    %696 = vmatprep.mubr.f32.mxu0 0.0
    %697 = vmatmul.mubr.f32.gmra.mrb[0].mxu0 %v602
    %v698 = vpop.f32.mrb[0].mxu0
    %v699 = vadd.f32 0.0, %v698
    %v700 = vpop.f32.mrb[0].mxu0
    %701 = vmatprep.mubr.f32.mxu0 0.0
    %702 = vmatmul.mubr.f32.gmra.mrb[0].mxu0 %v605
    %v703 = vpop.f32.mrb[0].mxu0
    %v704 = vadd.f32 0.0, %v703
    %v705 = vpop.f32.mrb[0].mxu0
    %706 = vmatprep.mubr.f32.mxu0 0.0
    %707 = vmatmul.mubr.f32.gmra.mrb[0].mxu0 %v608
    %v708 = vpop.f32.mrb[0].mxu0
    %v709 = vadd.f32 0.0, %v708
    %v710 = vpop.f32.mrb[0].mxu0
    %711 = vmatprep.mubr.f32.mxu0 0.0
    %712 = vmatmul.mubr.f32.gmra.mrb[0].mxu0 %v611
    %v713 = vpop.f32.mrb[0].mxu0
    %v714 = vadd.f32 0.0, %v713
    %v715 = vpop.f32.mrb[0].mxu0
    %716 = vmatprep.mubr.f32.mxu0 0.0
    %717 = vmatmul.mubr.f32.gmra.mrb[0].mxu0 %v614
    %v718 = vpop.f32.mrb[0].mxu0
    %v719 = vadd.f32 0.0, %v718
    %v720 = vpop.f32.mrb[0].mxu0
    %721 = vmatprep.mubr.f32.mxu0 0.0
    %722 = vmatmul.mubr.f32.gmra.mrb[0].mxu0 %v617
    %v723 = vpop.f32.mrb[0].mxu0
    %v724 = vadd.f32 0.0, %v723
    %v725 = vpop.f32.mrb[0].mxu0
    %726 = vdwg.mxu0
    %v727 = vsub.f32 0.0, %v689
    %v728 = vsub.f32 0.0, %v694
    %v729 = vsub.f32 0.0, %v699
    %v730 = vsub.f32 0.0, %v704
    %v731 = vsub.f32 0.0, %v709
    %v732 = vsub.f32 0.0, %v714
    %v733 = vsub.f32 0.0, %v719
    %v734 = vsub.f32 0.0, %v724
    %v735 = vmul.f32 %v727, 1.442695
    %v736 = vpow.pop %v735
    %v737 = vmul.f32 %v728, 1.442695
    %v738 = vpow.pop %v737
    %v739 = vmul.f32 %v729, 1.442695
    %v740 = vpow.pop %v739
    %v741 = vmul.f32 %v730, 1.442695
    %v742 = vpow.pop %v741
    %v743 = vmul.f32 %v731, 1.442695
    %v744 = vpow.pop %v743
    %v745 = vmul.f32 %v732, 1.442695
    %v746 = vpow.pop %v745
    %v747 = vmul.f32 %v733, 1.442695
    %v748 = vpow.pop %v747
    %v749 = vmul.f32 %v734, 1.442695
    %v750 = vpow.pop %v749
    %v751 = vadd.f32 %v736, 1.0
    %v752 = vadd.f32 %v738, 1.0
    %v753 = vadd.f32 %v740, 1.0
    %v754 = vadd.f32 %v742, 1.0
    %v755 = vadd.f32 %v744, 1.0
    %v756 = vadd.f32 %v746, 1.0
    %v757 = vadd.f32 %v748, 1.0
    %v758 = vadd.f32 %v750, 1.0
    %v759 = vrcp.pop %v751
    %v760 = vrcp.pop %v752
    %v761 = vrcp.pop %v753
    %v762 = vrcp.pop %v754
    %v763 = vrcp.pop %v755
    %v764 = vrcp.pop %v756
    %v765 = vrcp.pop %v757
    %v766 = vrcp.pop %v758
    %768 = vset.pattern.permute.xlu0 0
    %769 = vperm.xlu0 %768, %v759
    %v770 = vpop.permute.xlu0 %769
    %773 = vset.pattern.permute.xlu0 0
    %774 = vperm.xlu0 %773, %v760
    %v775 = vpop.permute.xlu0 %774
    %778 = vset.pattern.permute.xlu0 0
    %779 = vperm.xlu0 %778, %v761
    %v780 = vpop.permute.xlu0 %779
    %783 = vset.pattern.permute.xlu0 0
    %784 = vperm.xlu0 %783, %v762
    %v785 = vpop.permute.xlu0 %784
    %788 = vset.pattern.permute.xlu0 0
    %789 = vperm.xlu0 %788, %v763
    %v790 = vpop.permute.xlu0 %789
    %793 = vset.pattern.permute.xlu0 0
    %794 = vperm.xlu0 %793, %v764
    %v795 = vpop.permute.xlu0 %794
    %798 = vset.pattern.permute.xlu0 0
    %799 = vperm.xlu0 %798, %v765
    %v800 = vpop.permute.xlu0 %799
    %803 = vset.pattern.permute.xlu0 0
    %804 = vperm.xlu0 %803, %v766
    %v805 = vpop.permute.xlu0 %804
    %v807 = vmul.f32 %v464, %v770
    %v808 = vmul.f32 %v465, %v770
    %v809 = vmul.f32 %v466, %v775
    %v810 = vmul.f32 %v467, %v775
    %v811 = vmul.f32 %v468, %v780
    %v812 = vmul.f32 %v469, %v780
    %v813 = vmul.f32 %v470, %v785
    %v814 = vmul.f32 %v471, %v785
    %v815 = vmul.f32 %v472, %v790
    %v816 = vmul.f32 %v473, %v790
    %v817 = vmul.f32 %v474, %v795
    %v818 = vmul.f32 %v475, %v795
    %v819 = vmul.f32 %v476, %v800
    %v820 = vmul.f32 %v477, %v800
    %v821 = vmul.f32 %v478, %v805
    %v822 = vmul.f32 %v479, %v805
    %v823 = vpack.c.bf16 %v809, %v807
    %v824 = vpack.c.bf16 %v810, %v808
    %v825 = vpack.c.bf16 %v813, %v811
    %v826 = vpack.c.bf16 %v814, %v812
    %v827 = vpack.c.bf16 %v817, %v815
    %v828 = vpack.c.bf16 %v818, %v816
    %v829 = vpack.c.bf16 %v821, %v819
    %v830 = vpack.c.bf16 %v822, %v820
    %v839 = vunpack.c.l.b16 %v823
    %v840 = vunpack.c.l.b16 %v824
    %v841 = vunpack.c.h.b16 %v823
    %v842 = vunpack.c.h.b16 %v824
    %v843 = vunpack.c.l.b16 %v825
    %v844 = vunpack.c.l.b16 %v826
    %v845 = vunpack.c.h.b16 %v825
    %v846 = vunpack.c.h.b16 %v826
    %v847 = vunpack.c.l.b16 %v827
    %v848 = vunpack.c.l.b16 %v828
    %v849 = vunpack.c.h.b16 %v827
    %v850 = vunpack.c.h.b16 %v828
    %v851 = vunpack.c.l.b16 %v829
    %v852 = vunpack.c.l.b16 %v830
    %v853 = vunpack.c.h.b16 %v829
    %v854 = vunpack.c.h.b16 %v830
    %v855 = vpack.c.b16 %v840, %v839
    %v856 = vpack.c.b16 %v842, %v841
    %v857 = vpack.c.b16 %v844, %v843
    %v858 = vpack.c.b16 %v846, %v845
    %v859 = vpack.c.b16 %v848, %v847
    %v860 = vpack.c.b16 %v850, %v849
    %v861 = vpack.c.b16 %v852, %v851
    %v862 = vpack.c.b16 %v854, %v853
    %s871 = scalar_lea.vmem [#allocation5], 64
    %872 = vst [vmem:[%s871] sm:$0xff] %v855
    %873 = vst [vmem:[%s871 + $0x8] sm:$0xff] %v856
    %874 = vst [vmem:[%s871 + $0x10] sm:$0xff] %v857
    %875 = vst [vmem:[%s871 + $0x18] sm:$0xff] %v858
    %876 = vst [vmem:[%s871 + $0x20] sm:$0xff] %v859
    %877 = vst [vmem:[%s871 + $0x28] sm:$0xff] %v860
    %878 = vst [vmem:[%s871 + $0x30] sm:$0xff] %v861
    %879 = vst [vmem:[%s871 + $0x38] sm:$0xff] %v862
    // Predicated region
    $region18: #{tpu_custom_call.1} parent=1 // pred_check
      _
    $region19: #{tpu_custom_call.1} parent=1 // pred_check_branch
      %881 = sbr.rel (0) target = $region21
    $region20: #{tpu_custom_call.1} parent=1 // pred_region
      %s883 = ssub.s32 2048, 2048
      %884 = vsyncadd [#allocation4], %s883
      %s885 = sshll.u32 [#allocation5], 4
      %s886 = int_to_ptr.vmem [resolvable:$true] %s885
      %891 = dma.vmem_to_hbm [thread:$0]  %s886, 2048, %s3, [#allocation4], 128, 128, 8
    $region21: #{tpu_custom_call.1} parent=1 // pred_fallthru
      _
    // Predicated region
    $region22: #{tpu_custom_call.1} parent=1 // pred_check
      _
    $region23: #{tpu_custom_call.1} parent=1 // pred_check_branch
      %893 = sbr.rel (0) target = $region25
    $region24: #{tpu_custom_call.1} parent=1 // pred_region
      %894 = dma.done [#allocation4], 2048
    $region25: #{tpu_custom_call.1} parent=1 // pred_fallthru
      _
    %895 = vsyncpa [#allocation3], 1
    %896 = vsyncpa [#allocation4], 1

</llo_original>
